<compile_context>
chip_gen: v7x
topology: tpu7x:2x2x1
jax: 0.10.0
libtpu: 0.0.40
codegen_flags: <defaults>
</compile_context>

<pallas_src>
import functools

import numpy as np
import jax
import jax.numpy as jnp
from jax.experimental import pallas as pl
from jax.experimental.pallas import tpu as pltpu


_LANE = 128
# Per-block element budget (f32-equivalent ~4 MiB of x per block).
_MAX_BLOCK_ELEMS = (4 << 20) // 4


def relu_adpt_kernel(theta_ref, x_ref, o_ref, *, eps):
    """One (Bn, C, D, T) tile of the capsule-length ReLU gate."""
    x = x_ref[...]
    xf = x.astype(jnp.float32)
    # Capsule L2 length: sublane (XLU) reduction over the D axis.
    length = jnp.sqrt(jnp.sum(xf * xf, axis=2, keepdims=True))        # (Bn, C, 1, T)
    denom = length + eps
    # EUP approximate reciprocal + one Newton step -> ~f32 accuracy, no VPU divide.
    inv = pl.reciprocal(denom, approx=True)
    inv = inv * (2.0 - denom * inv)
    theta = theta_ref[...]                                            # (1, C, 1, 1)
    scale = jnp.maximum(length - theta, 0.0) * inv                    # (Bn, C, 1, T)
    o_ref[...] = (xf * scale).astype(o_ref.dtype)                     # broadcast over D


def _physical_vmem_bytes():
    try:
        info = pltpu.get_tpu_info()
        vmem = getattr(info, "vmem_capacity_bytes", None)
        if vmem:
            return int(vmem)
    except Exception:
        pass
    return 64 << 20  # v7x per-TensorCore; conservative lower bound for all gens


def _choose_tiles(N, CD, HW_pad, max_block_elems):
    """Pick (Bn, T): batch block and lane tile of H*W (T is a multiple of 128)."""
    t_cands = [t for t in range(_LANE, HW_pad + 1, _LANE) if HW_pad % t == 0]
    fitting = [t for t in t_cands if CD * t <= max_block_elems]
    T = max(fitting) if fitting else _LANE
    Bn = 1
    if T == HW_pad and N > 1:
        for b in range(2, N + 1):
            if N % b == 0 and b * CD * T <= max_block_elems:
                Bn = b
    # Keep >= 2 grid steps so both TensorCores (v7x megacore) get work.
    if (N // Bn) * (HW_pad // T) < 2:
        if Bn > 1:
            Bn = max(b for b in range(1, N) if N % b == 0)
        else:
            smaller = [t for t in fitting if HW_pad // t >= 2]
            if smaller:
                T = max(smaller)
    return Bn, T


def relu_adpt_forward(x_nchw, theta, num_C, num_D, eps=1e-4):
    """x_nchw: (N, C*D, H, W); theta reshapeable to (C,). Output dtype == input dtype."""
    N, CD, H, W = x_nchw.shape
    assert CD == num_C * num_D
    HW = H * W
    HW_pad = ((HW + _LANE - 1) // _LANE) * _LANE

    # Pure reshape (view); pad the flattened spatial axis to a lane multiple so
    # every store is a full-width vst. Padded x == 0 => padded output == 0.
    x4 = x_nchw.reshape(N, num_C, num_D, HW)
    if HW_pad != HW:
        x4 = jnp.pad(x4, ((0, 0), (0, 0), (0, 0), (0, HW_pad - HW)))
    theta4 = theta.reshape(1, num_C, 1, 1).astype(jnp.float32)

    Bn, T = _choose_tiles(N, CD, HW_pad, _MAX_BLOCK_ELEMS)
    grid = (N // Bn, HW_pad // T)

    itemsize = x4.dtype.itemsize
    blk_bytes = Bn * CD * T * itemsize
    blk_f32_bytes = Bn * CD * T * 4
    theta_bytes = num_C * 8 * _LANE * 4
    # input + output, double-buffered, plus headroom for in-kernel f32 temporaries.
    vmem_need = 4 * blk_bytes + 2 * theta_bytes + 6 * blk_f32_bytes + (2 << 20)
    vmem_limit = int(min(max(vmem_need, 32 << 20),
                         48 << 20,
                         (3 * _physical_vmem_bytes()) // 4))

    cost = pl.CostEstimate(
        flops=int(4 * N * CD * HW_pad + 6 * N * num_C * HW_pad),
        transcendentals=int(2 * N * num_C * HW_pad),       # sqrt + reciprocal
        bytes_accessed=int(2 * N * CD * HW_pad * itemsize + num_C * 4),
    )

    out4 = pl.pallas_call(
        functools.partial(relu_adpt_kernel, eps=eps),
        out_shape=jax.ShapeDtypeStruct((N, num_C, num_D, HW_pad), x4.dtype),
        grid=grid,
        in_specs=[
            pl.BlockSpec((1, num_C, 1, 1), lambda n, t: (0, 0, 0, 0)),        # theta (resident)
            pl.BlockSpec((Bn, num_C, num_D, T), lambda n, t: (n, 0, 0, t)),   # x tile
        ],
        out_specs=pl.BlockSpec((Bn, num_C, num_D, T), lambda n, t: (n, 0, 0, t)),
        compiler_params=pltpu.CompilerParams(
            dimension_semantics=("parallel", "parallel"),
            vmem_limit_bytes=vmem_limit),
        cost_estimate=cost,
    )(theta4, x4)

    if HW_pad != HW:
        out4 = out4[..., :HW]
    return out4.reshape(N, CD, H, W)


def relu_adpt_reference(x_nchw, theta, num_C, num_D, eps=1e-4):
    """Plain-JAX reference (same math as the PyTorch module), computed in f32."""
    N, CD, H, W = x_nchw.shape
    xc = x_nchw.astype(jnp.float32).reshape(N, num_C, num_D, H, W)
    length = jnp.sqrt(jnp.sum(xc * xc, axis=2, keepdims=True))         # (N,C,1,H,W)
    th = theta.reshape(1, num_C, 1, 1, 1).astype(jnp.float32)
    y = jnp.maximum(length - th, 0.0) * xc / (length + eps)
    return y.reshape(N, CD, H, W)


if __name__ == "__main__":
    num_C, num_D = 4, 8          # capsule channels / dims
    EPS = 1e-4                   # module default eps=0.0001

    key = jax.random.PRNGKey(0)
    kx, kt, kx2 = jax.random.split(key, 3)

    # PyTorch init fills theta with 0; also exercise a non-trivial theta.
    theta_zero = jnp.zeros((1, num_C, 1, 1, 1), dtype=jnp.float32)
    theta_rand = jax.random.uniform(kt, (1, num_C, 1, 1, 1),
                                    minval=0.0, maxval=1.0, dtype=jnp.float32)

    # Case 1: f32, lane-aligned spatial size (16x16 -> HW=256).
    x = jax.random.normal(kx, (2, num_C * num_D, 16, 16), dtype=jnp.float32)
    for theta in (theta_zero, theta_rand):
        out = jax.block_until_ready(relu_adpt_forward(x, theta, num_C, num_D, eps=EPS))
        ref = relu_adpt_reference(x, theta, num_C, num_D, eps=EPS)
        np.testing.assert_allclose(np.asarray(out), np.asarray(ref),
                                   rtol=1e-5, atol=1e-5)

    # Case 2: f32, non-multiple-of-128 spatial size (7x7 -> padded to 128 lanes).
    x2 = jax.random.normal(kx2, (2, num_C * num_D, 7, 7), dtype=jnp.float32)
    out2 = jax.block_until_ready(relu_adpt_forward(x2, theta_rand, num_C, num_D, eps=EPS))
    ref2 = relu_adpt_reference(x2, theta_rand, num_C, num_D, eps=EPS)
    np.testing.assert_allclose(np.asarray(out2), np.asarray(ref2),
                               rtol=1e-5, atol=1e-5)

    # Case 3: bf16 I/O (dtype preserved on the wire; math done in f32 in-kernel).
    xb = x.astype(jnp.bfloat16)
    outb = jax.block_until_ready(relu_adpt_forward(xb, theta_rand, num_C, num_D, eps=EPS))
    assert outb.dtype == jnp.bfloat16
    refb = relu_adpt_reference(xb, theta_rand, num_C, num_D, eps=EPS)
    np.testing.assert_allclose(np.asarray(outb.astype(jnp.float32)),
                               np.asarray(refb), rtol=2e-2, atol=2e-2)

    print("KERNEL_OK")
</pallas_src>

<mosaic_0001>
module attributes {stable_mosaic.version = 11 : i64} {
  func.func @relu_adpt_kernel(%arg0: i32, %arg1: i32, %arg2: memref<1x4x1x1xf32, #tpu.memory_space<vmem>>, %arg3: memref<1x4x8x256xf32, #tpu.memory_space<vmem>>, %arg4: memref<1x4x8x256xf32, #tpu.memory_space<vmem>>) attributes {dimension_semantics = [#tpu.dimension_semantics<parallel>, #tpu.dimension_semantics<parallel>], iteration_bounds = array<i64: 2, 1>, scalar_prefetch = 0 : i64, scratch_operands = 0 : i64, tpu.core_type = #tpu.core_type<tc>, window_params = [{pipeline_mode = #tpu.pipeline_mode<synchronous>, transform_indices = @transform_0, window_bounds = array<i64: 1, 4, 1, 1>}, {transform_indices = @transform_1, window_bounds = array<i64: 1, 4, 8, 256>}, {transform_indices = @transform_2, window_bounds = array<i64: 1, 4, 8, 256>}]} {
    %c0 = arith.constant 0 : index
    %c0_0 = arith.constant 0 : index
    %c0_1 = arith.constant 0 : index
    %c0_2 = arith.constant 0 : index
    %0 = vector.load %arg3[%c0, %c0_0, %c0_1, %c0_2] : memref<1x4x8x256xf32, #tpu.memory_space<vmem>>, vector<1x4x8x256xf32>
    %1 = arith.mulf %0, %0 : vector<1x4x8x256xf32>
    %cst = arith.constant dense<0.000000e+00> : vector<1x4x256xf32>
    %2 = vector.multi_reduction <add>, %1, %cst [2] : vector<1x4x8x256xf32> to vector<1x4x256xf32>
    %3 = vector.shape_cast %2 : vector<1x4x256xf32> to vector<1x4x1x256xf32>
    %4 = math.sqrt %3 : vector<1x4x1x256xf32>
    %cst_3 = arith.constant 9.99999974E-5 : f32
    %5 = vector.broadcast %cst_3 : f32 to vector<1x4x1x256xf32>
    %6 = arith.addf %4, %5 : vector<1x4x1x256xf32>
    %7 = tpu.reciprocal %6 {approx = true} : vector<1x4x1x256xf32> -> vector<1x4x1x256xf32>
    %8 = arith.mulf %6, %7 : vector<1x4x1x256xf32>
    %cst_4 = arith.constant 2.000000e+00 : f32
    %9 = vector.broadcast %cst_4 : f32 to vector<1x4x1x256xf32>
    %10 = arith.subf %9, %8 : vector<1x4x1x256xf32>
    %11 = arith.mulf %7, %10 : vector<1x4x1x256xf32>
    %c0_5 = arith.constant 0 : index
    %c0_6 = arith.constant 0 : index
    %c0_7 = arith.constant 0 : index
    %c0_8 = arith.constant 0 : index
    %12 = vector.load %arg2[%c0_5, %c0_6, %c0_7, %c0_8] : memref<1x4x1x1xf32, #tpu.memory_space<vmem>>, vector<1x4x1x1xf32>
    %13 = vector.broadcast %12 : vector<1x4x1x1xf32> to vector<1x4x1x256xf32>
    %14 = arith.subf %4, %13 : vector<1x4x1x256xf32>
    %cst_9 = arith.constant 0.000000e+00 : f32
    %15 = vector.broadcast %cst_9 : f32 to vector<1x4x1x256xf32>
    %16 = arith.maximumf %14, %15 : vector<1x4x1x256xf32>
    %17 = arith.mulf %16, %11 : vector<1x4x1x256xf32>
    %18 = vector.broadcast %17 : vector<1x4x1x256xf32> to vector<1x4x8x256xf32>
    %19 = arith.mulf %0, %18 : vector<1x4x8x256xf32>
    %c0_10 = arith.constant 0 : index
    %c0_11 = arith.constant 0 : index
    %c0_12 = arith.constant 0 : index
    %c0_13 = arith.constant 0 : index
    %20 = vector.load %arg4[%c0_10, %c0_11, %c0_12, %c0_13] : memref<1x4x8x256xf32, #tpu.memory_space<vmem>>, vector<1x4x8x256xf32>
    tpu.vector_store %arg4[%c0_10, %c0_11, %c0_12, %c0_13], %19 {strides = array<i32>} : memref<1x4x8x256xf32, #tpu.memory_space<vmem>>, vector<1x4x8x256xf32>,
    return
  }
  func.func @transform_0(%arg0: i32, %arg1: i32) -> (i32, i32, i32, i32) {
    %c0_i32 = arith.constant 0 : i32
    %c0_i32_0 = arith.constant 0 : i32
    %c0_i32_1 = arith.constant 0 : i32
    %c0_i32_2 = arith.constant 0 : i32
    %c0_i32_3 = arith.constant 0 : i32
    return %c0_i32, %c0_i32_0, %c0_i32_1, %c0_i32_2 : i32, i32, i32, i32
  }
  func.func @transform_1(%arg0: i32, %arg1: i32) -> (i32, i32, i32, i32) {
    %c0_i32 = arith.constant 0 : i32
    %c0_i32_0 = arith.constant 0 : i32
    %c0_i32_1 = arith.constant 0 : i32
    return %arg0, %c0_i32, %c0_i32_0, %arg1 : i32, i32, i32, i32
  }
  func.func @transform_2(%arg0: i32, %arg1: i32) -> (i32, i32, i32, i32) {
    %c0_i32 = arith.constant 0 : i32
    %c0_i32_0 = arith.constant 0 : i32
    %c0_i32_1 = arith.constant 0 : i32
    return %arg0, %c0_i32, %c0_i32_0, %arg1 : i32, i32, i32, i32
  }
}

</mosaic_0001>

<llo_original>
// kernel: tpu_custom_call.1
$region0: #{tpu_custom_call.1}
  #allocation0 [shape = 'u32[]', space=smem, size = 0x4, offset = 0x4, fixed_abs, tag = 'smem constant byte address 0x4 - core index']
  #allocation1 [shape = 'u32[144,128]{1,0:T(1,128)}', space=vmem, size = 0x12000, scoped, tag = 'internal scratch']
  %s0 = inlined_call_operand.vmem [shape: f32[1,4,1,1], index: 0, kind: input, shape index: {}]
  %s1 = inlined_call_operand.hbm [shape: f32[2,4,8,256], index: 1, kind: input, shape index: {}]
  %s2 = inlined_call_operand.hbm [shape: f32[2,4,8,256], index: 2, kind: output, shape index: {}]
  %s3 = sld [smem:[#allocation0]]
  $region45: #{tpu_custom_call.1} parent=0
    _
  %s5 = ssub.s32 1, %s3
  %s6 = scalar_select 0, %s5, %s3
  $region1: #{tpu_custom_call.1} parent=0
    #allocation2 [shape = 'u8[65536]{0}', space=vmem, size = 0x10000, scoped, tag = 'input window, operand 1']
    #allocation3 [shape = 's32[2]{0}', space=sflag, size = 0x8, scoped, tag = 'scoped memory for tpu_custom_call.1']
    #allocation4 [shape = 's32[2]{0}', space=sflag, size = 0x8, scoped, tag = 'scoped memory for tpu_custom_call.1']
    #allocation5 [shape = 'u8[65536]{0}', space=vmem, size = 0x10000, scoped, tag = 'output window, operand 0']
    %7 = vsyncpa [#allocation3], 0
    %s8 = scalar_lea.sflag [#allocation3], 1
    %9 = vsyncpa %s8, 0
    %10 = vsyncpa [#allocation4], 0
    %s11 = scalar_lea.sflag [#allocation4], 1
    %12 = vsyncpa %s11, 0
    loop: start=0, step=1, limit=4
    $region2: #{tpu_custom_call.1} parent=1 // loop_pre_header
      _
    $region3: #{tpu_custom_call.1} parent=1 // loop_header
      %s14 = sphi 0, %s18
      %p15 = scmp.ge.s32.totalorder %s14, 4
      %s21 = sphi 0, %s33
      %s22 = sphi 0, %s29
      %s23 = sphi 0, %s21
      %s24 = sphi 0, %s22
      %s25 = sphi 0, %s23
      %s26 = sphi 0, %s24
      %s34 = sphi 0, %s34
      %s36 = sphi 0, %s34
      %s37 = sphi 0, %s36
      %s51 = sphi 0, %s37
      %s59 = sphi 0, %s61
      %s62 = sphi 0, %s59
      %s63 = sphi 0, %s62
      %s79 = sphi 0, %s63
      %s87 = sphi 0, %s89
      %s90 = sphi 0, %s87
      %s91 = sphi 0, %s90
      %s107 = sphi 0, %s91
    $region4: #{tpu_custom_call.1} parent=1 // loop_header_branch
      %17 = sbr.rel (%p15) target = $region8
    $region5: #{tpu_custom_call.1} parent=1 // loop_body
      %s19 = ssub.s32 %s14, 1
      %s20 = ssub.s32 %s14, 2
      %s27 = sadd.s32 1, %s22
      %p28 = scmp.ge.s32.totalorder %s27, 1
      %s29 = scalar_select %p28, 0, %s27
      %s30 = sadd.s32 1, %s21
      %s31 = scalar_select %p28, %s30, %s21
      %p32 = scmp.ge.s32.totalorder %s31, 2
      %s33 = scalar_select %p32, 0, %s31
      %s35 = sadd.s32 %s34, 1
      %p38 = scmp.eq.s32.totalorder %s14, 1
      %p39 = scmp.ne.s32.totalorder %s34, %s36
      %p40 = scmp.eq.s32.totalorder %s14, 0
      %p41 = por %p39, %p40
      %p42 = scmp.ne.s32.totalorder %s34, %s36
      %p43 = scmp.eq.s32.totalorder %s19, 1
      %p44 = por %p42, %p43
      %p45 = scmp.ne.s32.totalorder %s36, %s37
      %p46 = scmp.eq.s32.totalorder %s19, 0
      %p47 = por %p45, %p46
      %p48 = scmp.ne.s32.totalorder %s36, %s37
      %p49 = scmp.eq.s32.totalorder %s20, 1
      %p50 = por %p48, %p49
      %p52 = scmp.ne.s32.totalorder %s37, %s51
      %p53 = scmp.eq.s32.totalorder %s20, 0
      %p54 = por %p52, %p53
      %s55 = ssub.s32 %s21, %s33
      %s56 = ssub.s32 %s22, %s29
      %s57 = sor.u32 %s55, %s56
      %p58 = scmp.eq.s32.totalorder %s57, 0
      %s60 = sadd.s32 %s59, 1
      %s61 = scalar_select %p58, %s59, %s60
      %p64 = pneg %p58
      %p65 = scmp.eq.s32.totalorder %s14, 1
      %p66 = por %p64, %p65
      %p67 = scmp.ne.s32.totalorder %s59, %s62
      %p68 = scmp.eq.s32.totalorder %s14, 0
      %p69 = por %p67, %p68
      %p70 = scmp.ne.s32.totalorder %s59, %s62
      %p71 = scmp.eq.s32.totalorder %s19, 1
      %p72 = por %p70, %p71
      %p73 = scmp.ne.s32.totalorder %s62, %s63
      %p74 = scmp.eq.s32.totalorder %s19, 0
      %p75 = por %p73, %p74
      %p76 = scmp.ne.s32.totalorder %s62, %s63
      %p77 = scmp.eq.s32.totalorder %s20, 1
      %p78 = por %p76, %p77
      %p80 = scmp.ne.s32.totalorder %s63, %s79
      %p81 = scmp.eq.s32.totalorder %s20, 0
      %p82 = por %p80, %p81
      %s83 = ssub.s32 %s21, %s33
      %s84 = ssub.s32 %s22, %s29
      %s85 = sor.u32 %s83, %s84
      %p86 = scmp.eq.s32.totalorder %s85, 0
      %s88 = sadd.s32 %s87, 1
      %s89 = scalar_select %p86, %s87, %s88
      %p92 = pneg %p86
      %p93 = scmp.eq.s32.totalorder %s14, 1
      %p94 = por %p92, %p93
      %p95 = scmp.ne.s32.totalorder %s87, %s90
      %p96 = scmp.eq.s32.totalorder %s14, 0
      %p97 = por %p95, %p96
      %p98 = scmp.ne.s32.totalorder %s87, %s90
      %p99 = scmp.eq.s32.totalorder %s19, 1
      %p100 = por %p98, %p99
      %p101 = scmp.ne.s32.totalorder %s90, %s91
      %p102 = scmp.eq.s32.totalorder %s19, 0
      %p103 = por %p101, %p102
      %p104 = scmp.ne.s32.totalorder %s90, %s91
      %p105 = scmp.eq.s32.totalorder %s20, 1
      %p106 = por %p104, %p105
      %p108 = scmp.ne.s32.totalorder %s91, %s107
      %p109 = scmp.eq.s32.totalorder %s20, 0
      %p110 = por %p108, %p109
      %p111 = scmp.le.s32.totalorder 1, %s14
      %p112 = scmp.lt.s32.totalorder %s14, 3
      %p113 = pnand %p111, %p112
      %p114 = pneg %p113
      // Predicated region
      $region9: #{tpu_custom_call.1} parent=5 // pred_check
        _
      $region10: #{tpu_custom_call.1} parent=5 // pred_check_branch
        %116 = sbr.rel (%p113) target = $region12
      $region11: #{tpu_custom_call.1} parent=5 // pred_region
        %s117 = ssub.s32 %s14, 1
        // Predicated region
        $region13: #{tpu_custom_call.1} parent=11 // pred_check
          %p118 = pneg %p47
        $region14: #{tpu_custom_call.1} parent=11 // pred_check_branch
          %120 = sbr.rel (%p118) target = $region16
        $region15: #{tpu_custom_call.1} parent=11 // pred_region
          _
        $region16: #{tpu_custom_call.1} parent=11 // pred_fallthru
          _
      $region12: #{tpu_custom_call.1} parent=5 // pred_fallthru
        _
      %p121 = scmp.lt.s32.totalorder %s14, 2
      // Predicated region
      $region17: #{tpu_custom_call.1} parent=5 // pred_check
        %p122 = pneg %p121
      $region18: #{tpu_custom_call.1} parent=5 // pred_check_branch
        %124 = sbr.rel (%p122) target = $region20
      $region19: #{tpu_custom_call.1} parent=5 // pred_region
        // Predicated region
        $region21: #{tpu_custom_call.1} parent=19 // pred_check
          %p125 = pneg %p69
        $region22: #{tpu_custom_call.1} parent=19 // pred_check_branch
          %127 = sbr.rel (%p125) target = $region24
        $region23: #{tpu_custom_call.1} parent=19 // pred_region
          %s128 = sand.u32 %s59, 1
          %s129 = scalar_lea.sflag [#allocation3], %s128
          %s130 = sand.u32 %s59, 1
          %s131 = smul.addr %s130, 64
          %s132 = scalar_lea.vmem [#allocation2], %s131
          %s133 = smul.u32 2, %s22
          %s135 = ssub.s32 1024, 1024
          %136 = vsyncadd %s129, %s135
          %s137 = smul.addr %s21, 8
          %s138 = sadd.s32 %s133, %s137
          %s139 = smul.addr %s138, 128
          %s140 = scalar_lea.hbm %s1, %s139
          %s141 = sshll.u32 %s132, 4
          %s142 = int_to_ptr.vmem [resolvable:$true] %s141
          %147 = dma.hbm_to_vmem [thread:$0]  %s140, 1024, %s142, %s129, 256, 256, 16
        $region24: #{tpu_custom_call.1} parent=19 // pred_fallthru
          _
      $region20: #{tpu_custom_call.1} parent=5 // pred_fallthru
        _
      %p148 = scmp.le.s32.totalorder 1, %s14
      %p149 = scmp.lt.s32.totalorder %s14, 3
      %p150 = pnand %p148, %p149
      %p151 = pneg %p150
      // Predicated region
      $region25: #{tpu_custom_call.1} parent=5 // pred_check
        _
      $region26: #{tpu_custom_call.1} parent=5 // pred_check_branch
        %153 = sbr.rel (%p150) target = $region28
      $region27: #{tpu_custom_call.1} parent=5 // pred_region
        %s154 = ssub.s32 %s14, 1
        %s155 = sand.u32 %s62, 1
        %s156 = scalar_lea.sflag [#allocation3], %s155
        %s157 = sand.u32 %s62, 1
        %s158 = smul.addr %s157, 64
        %s159 = scalar_lea.vmem [#allocation2], %s158
        // Predicated region
        $region29: #{tpu_custom_call.1} parent=27 // pred_check
          %p160 = pneg %p75
        $region30: #{tpu_custom_call.1} parent=27 // pred_check_branch
          %162 = sbr.rel (%p160) target = $region32
        $region31: #{tpu_custom_call.1} parent=27 // pred_region
          %163 = dma.done %s156, 1024
        $region32: #{tpu_custom_call.1} parent=27 // pred_fallthru
          _
        %p164 = pneg %p47
        %p165 = pneg %p44
        %s166 = sand.u32 %s62, 1
        %s167 = scalar_lea.sflag [#allocation3], %s166
        %s168 = sand.u32 %s62, 1
        %s169 = smul.addr %s168, 64
        %s170 = scalar_lea.vmem [#allocation2], %s169
        %p171 = pneg %p75
        %p172 = pneg %p72
        %p173 = pneg %p103
        %p174 = pneg %p100
        %s175 = sand.u32 %s90, 1
        %s176 = scalar_lea.sflag [#allocation4], %s175
        %s177 = sand.u32 %s90, 1
        %s178 = smul.addr %s177, 64
        %s179 = scalar_lea.vmem [#allocation5], %s178
        %s180 = smul.u32 2, %s24
        %s181 = smul.u32 2, %s24
        %v182 = vld [vmem:[%s159] sm:$0xff]
        %v183 = vld [vmem:[%s159 + $0x8] sm:$0xff]
        %v184 = vld [vmem:[%s159 + $0x10] sm:$0xff]
        %v185 = vld [vmem:[%s159 + $0x18] sm:$0xff]
        %v186 = vld [vmem:[%s159 + $0x20] sm:$0xff]
        %v187 = vld [vmem:[%s159 + $0x28] sm:$0xff]
        %v188 = vld [vmem:[%s159 + $0x30] sm:$0xff]
        %v189 = vld [vmem:[%s159 + $0x38] sm:$0xff]
        %v190 = vmul.f32 %v182, %v182
        %v191 = vmul.f32 %v183, %v183
        %v192 = vmul.f32 %v184, %v184
        %v193 = vmul.f32 %v185, %v185
        %v194 = vmul.f32 %v186, %v186
        %v195 = vmul.f32 %v187, %v187
        %v196 = vmul.f32 %v188, %v188
        %v197 = vmul.f32 %v189, %v189
        %v198 = vrot.slane %v190, 4
        %v199 = vadd.f32 %v190, %v198
        %v200 = vrot.slane %v199, 2
        %v201 = vadd.f32 %v199, %v200
        %v202 = vrot.slane %v201, 1
        %v203 = vadd.f32 %v201, %v202
        %v204 = vrot.slane %v191, 4
        %v205 = vadd.f32 %v191, %v204
        %v206 = vrot.slane %v205, 2
        %v207 = vadd.f32 %v205, %v206
        %v208 = vrot.slane %v207, 1
        %v209 = vadd.f32 %v207, %v208
        %v210 = vrot.slane %v192, 4
        %v211 = vadd.f32 %v192, %v210
        %v212 = vrot.slane %v211, 2
        %v213 = vadd.f32 %v211, %v212
        %v214 = vrot.slane %v213, 1
        %v215 = vadd.f32 %v213, %v214
        %v216 = vrot.slane %v193, 4
        %v217 = vadd.f32 %v193, %v216
        %v218 = vrot.slane %v217, 2
        %v219 = vadd.f32 %v217, %v218
        %v220 = vrot.slane %v219, 1
        %v221 = vadd.f32 %v219, %v220
        %v222 = vrot.slane %v194, 4
        %v223 = vadd.f32 %v194, %v222
        %v224 = vrot.slane %v223, 2
        %v225 = vadd.f32 %v223, %v224
        %v226 = vrot.slane %v225, 1
        %v227 = vadd.f32 %v225, %v226
        %v228 = vrot.slane %v195, 4
        %v229 = vadd.f32 %v195, %v228
        %v230 = vrot.slane %v229, 2
        %v231 = vadd.f32 %v229, %v230
        %v232 = vrot.slane %v231, 1
        %v233 = vadd.f32 %v231, %v232
        %v234 = vrot.slane %v196, 4
        %v235 = vadd.f32 %v196, %v234
        %v236 = vrot.slane %v235, 2
        %v237 = vadd.f32 %v235, %v236
        %v238 = vrot.slane %v237, 1
        %v239 = vadd.f32 %v237, %v238
        %v240 = vrot.slane %v197, 4
        %v241 = vadd.f32 %v197, %v240
        %v242 = vrot.slane %v241, 2
        %v243 = vadd.f32 %v241, %v242
        %v244 = vrot.slane %v243, 1
        %v245 = vadd.f32 %v243, %v244
        %v246 = vrsqrt.pop %v203
        %v247 = vmul.f32 %v203, %v246
        %vm248 = vcmp.eq.f32.partialorder %v203, inf
        %v249 = vsel %vm248, %v203, %v247
        %vm250 = vcmp.eq.f32.partialorder %v203, 0.0
        %v251 = vand.u32 %v203, 2147483648
        %v252 = vsel %vm250, %v251, %v249
        %v253 = vrsqrt.pop %v209
        %v254 = vmul.f32 %v209, %v253
        %vm255 = vcmp.eq.f32.partialorder %v209, inf
        %v256 = vsel %vm255, %v209, %v254
        %vm257 = vcmp.eq.f32.partialorder %v209, 0.0
        %v258 = vand.u32 %v209, 2147483648
        %v259 = vsel %vm257, %v258, %v256
        %v260 = vrsqrt.pop %v215
        %v261 = vmul.f32 %v215, %v260
        %vm262 = vcmp.eq.f32.partialorder %v215, inf
        %v263 = vsel %vm262, %v215, %v261
        %vm264 = vcmp.eq.f32.partialorder %v215, 0.0
        %v265 = vand.u32 %v215, 2147483648
        %v266 = vsel %vm264, %v265, %v263
        %v267 = vrsqrt.pop %v221
        %v268 = vmul.f32 %v221, %v267
        %vm269 = vcmp.eq.f32.partialorder %v221, inf
        %v270 = vsel %vm269, %v221, %v268
        %vm271 = vcmp.eq.f32.partialorder %v221, 0.0
        %v272 = vand.u32 %v221, 2147483648
        %v273 = vsel %vm271, %v272, %v270
        %v274 = vrsqrt.pop %v227
        %v275 = vmul.f32 %v227, %v274
        %vm276 = vcmp.eq.f32.partialorder %v227, inf
        %v277 = vsel %vm276, %v227, %v275
        %vm278 = vcmp.eq.f32.partialorder %v227, 0.0
        %v279 = vand.u32 %v227, 2147483648
        %v280 = vsel %vm278, %v279, %v277
        %v281 = vrsqrt.pop %v233
        %v282 = vmul.f32 %v233, %v281
        %vm283 = vcmp.eq.f32.partialorder %v233, inf
        %v284 = vsel %vm283, %v233, %v282
        %vm285 = vcmp.eq.f32.partialorder %v233, 0.0
        %v286 = vand.u32 %v233, 2147483648
        %v287 = vsel %vm285, %v286, %v284
        %v288 = vrsqrt.pop %v239
        %v289 = vmul.f32 %v239, %v288
        %vm290 = vcmp.eq.f32.partialorder %v239, inf
        %v291 = vsel %vm290, %v239, %v289
        %vm292 = vcmp.eq.f32.partialorder %v239, 0.0
        %v293 = vand.u32 %v239, 2147483648
        %v294 = vsel %vm292, %v293, %v291
        %v295 = vrsqrt.pop %v245
        %v296 = vmul.f32 %v245, %v295
        %vm297 = vcmp.eq.f32.partialorder %v245, inf
        %v298 = vsel %vm297, %v245, %v296
        %vm299 = vcmp.eq.f32.partialorder %v245, 0.0
        %v300 = vand.u32 %v245, 2147483648
        %v301 = vsel %vm299, %v300, %v298
        %v302 = vadd.f32 %v252, 0.0001
        %v303 = vadd.f32 %v259, 0.0001
        %v304 = vadd.f32 %v266, 0.0001
        %v305 = vadd.f32 %v273, 0.0001
        %v306 = vadd.f32 %v280, 0.0001
        %v307 = vadd.f32 %v287, 0.0001
        %v308 = vadd.f32 %v294, 0.0001
        %v309 = vadd.f32 %v301, 0.0001
        %v310 = vrcp.pop %v302
        %v311 = vrcp.pop %v303
        %v312 = vrcp.pop %v304
        %v313 = vrcp.pop %v305
        %v314 = vrcp.pop %v306
        %v315 = vrcp.pop %v307
        %v316 = vrcp.pop %v308
        %v317 = vrcp.pop %v309
        %v318 = vmul.f32 %v302, %v310
        %v319 = vmul.f32 %v303, %v311
        %v320 = vmul.f32 %v304, %v312
        %v321 = vmul.f32 %v305, %v313
        %v322 = vmul.f32 %v306, %v314
        %v323 = vmul.f32 %v307, %v315
        %v324 = vmul.f32 %v308, %v316
        %v325 = vmul.f32 %v309, %v317
        %v326 = vsub.f32 2.0, %v318
        %v327 = vsub.f32 2.0, %v319
        %v328 = vsub.f32 2.0, %v320
        %v329 = vsub.f32 2.0, %v321
        %v330 = vsub.f32 2.0, %v322
        %v331 = vsub.f32 2.0, %v323
        %v332 = vsub.f32 2.0, %v324
        %v333 = vsub.f32 2.0, %v325
        %v334 = vmul.f32 %v310, %v326
        %v335 = vmul.f32 %v311, %v327
        %v336 = vmul.f32 %v312, %v328
        %v337 = vmul.f32 %v313, %v329
        %v338 = vmul.f32 %v314, %v330
        %v339 = vmul.f32 %v315, %v331
        %v340 = vmul.f32 %v316, %v332
        %v341 = vmul.f32 %v317, %v333
        %v342 = vld [vmem:[%s0] sm:$0x1]
        %v343 = vld [vmem:[%s0 + $0x1] sm:$0x1]
        %v344 = vld [vmem:[%s0 + $0x2] sm:$0x1]
        %v345 = vld [vmem:[%s0 + $0x3] sm:$0x1]
        %347 = vset.pattern.permute.xlu0 0
        %348 = vperm.xlu0 %347, %v342
        %v349 = vpop.permute.xlu0 %348
        %v351 = vlaneseq
        %v352 = vshrl.u32 %v351, 7
        %v353 = vsub.s32 0, %v352
        %v354 = vrot.slane %v349, %v353
        %356 = vset.pattern.permute.xlu0 0
        %357 = vperm.xlu0 %356, %v343
        %v358 = vpop.permute.xlu0 %357
        %v360 = vlaneseq
        %v361 = vshrl.u32 %v360, 7
        %v362 = vsub.s32 0, %v361
        %v363 = vrot.slane %v358, %v362
        %365 = vset.pattern.permute.xlu0 0
        %366 = vperm.xlu0 %365, %v344
        %v367 = vpop.permute.xlu0 %366
        %v369 = vlaneseq
        %v370 = vshrl.u32 %v369, 7
        %v371 = vsub.s32 0, %v370
        %v372 = vrot.slane %v367, %v371
        %374 = vset.pattern.permute.xlu0 0
        %375 = vperm.xlu0 %374, %v345
        %v376 = vpop.permute.xlu0 %375
        %v378 = vlaneseq
        %v379 = vshrl.u32 %v378, 7
        %v380 = vsub.s32 0, %v379
        %v381 = vrot.slane %v376, %v380
        %v382 = vsub.f32 %v252, %v354
        %v383 = vsub.f32 %v259, %v354
        %v384 = vsub.f32 %v266, %v363
        %v385 = vsub.f32 %v273, %v363
        %v386 = vsub.f32 %v280, %v372
        %v387 = vsub.f32 %v287, %v372
        %v388 = vsub.f32 %v294, %v381
        %v389 = vsub.f32 %v301, %v381
        %v390 = vmax.f32 %v382, 0.0
        %v391 = vmax.f32 %v383, 0.0
        %v392 = vmax.f32 %v384, 0.0
        %v393 = vmax.f32 %v385, 0.0
        %v394 = vmax.f32 %v386, 0.0
        %v395 = vmax.f32 %v387, 0.0
        %v396 = vmax.f32 %v388, 0.0
        %v397 = vmax.f32 %v389, 0.0
        %v398 = vmul.f32 %v390, %v334
        %v399 = vmul.f32 %v391, %v335
        %v400 = vmul.f32 %v392, %v336
        %v401 = vmul.f32 %v393, %v337
        %v402 = vmul.f32 %v394, %v338
        %v403 = vmul.f32 %v395, %v339
        %v404 = vmul.f32 %v396, %v340
        %v405 = vmul.f32 %v397, %v341
        %v406 = vmul.f32 %v182, %v398
        %v407 = vmul.f32 %v183, %v399
        %v408 = vmul.f32 %v184, %v400
        %v409 = vmul.f32 %v185, %v401
        %v410 = vmul.f32 %v186, %v402
        %v411 = vmul.f32 %v187, %v403
        %v412 = vmul.f32 %v188, %v404
        %v413 = vmul.f32 %v189, %v405
        %414 = vst [vmem:[%s179] sm:$0xff] %v406
        %415 = vst [vmem:[%s179 + $0x8] sm:$0xff] %v407
        %416 = vst [vmem:[%s179 + $0x10] sm:$0xff] %v408
        %417 = vst [vmem:[%s179 + $0x18] sm:$0xff] %v409
        %418 = vst [vmem:[%s179 + $0x20] sm:$0xff] %v410
        %419 = vst [vmem:[%s179 + $0x28] sm:$0xff] %v411
        %420 = vst [vmem:[%s179 + $0x30] sm:$0xff] %v412
        %421 = vst [vmem:[%s179 + $0x38] sm:$0xff] %v413
        %s422 = sand.u32 %s90, 1
        %s423 = scalar_lea.sflag [#allocation4], %s422
        %s424 = sand.u32 %s90, 1
        %s425 = smul.addr %s424, 64
        %s426 = scalar_lea.vmem [#allocation5], %s425
        // Predicated region
        $region33: #{tpu_custom_call.1} parent=27 // pred_check
          %p427 = pneg %p100
        $region34: #{tpu_custom_call.1} parent=27 // pred_check_branch
          %429 = sbr.rel (%p427) target = $region36
        $region35: #{tpu_custom_call.1} parent=27 // pred_region
          %s430 = smul.u32 2, %s24
          %s432 = ssub.s32 1024, 1024
          %433 = vsyncadd %s423, %s432
          %s434 = smul.addr %s23, 8
          %s435 = sadd.s32 %s430, %s434
          %s436 = smul.addr %s435, 128
          %s437 = scalar_lea.hbm %s2, %s436
          %s438 = sshll.u32 %s426, 4
          %s439 = int_to_ptr.vmem [resolvable:$true] %s438
          %444 = dma.vmem_to_hbm [thread:$0]  %s439, 1024, %s437, %s423, 256, 256, 16
        $region36: #{tpu_custom_call.1} parent=27 // pred_fallthru
          _
      $region28: #{tpu_custom_call.1} parent=5 // pred_fallthru
        _
      %p445 = scmp.le.s32.totalorder 2, %s14
      // Predicated region
      $region37: #{tpu_custom_call.1} parent=5 // pred_check
        %p446 = pneg %p445
      $region38: #{tpu_custom_call.1} parent=5 // pred_check_branch
        %448 = sbr.rel (%p446) target = $region40
      $region39: #{tpu_custom_call.1} parent=5 // pred_region
        %s449 = ssub.s32 %s14, 2
        // Predicated region
        $region41: #{tpu_custom_call.1} parent=39 // pred_check
          %p450 = pneg %p106
        $region42: #{tpu_custom_call.1} parent=39 // pred_check_branch
          %452 = sbr.rel (%p450) target = $region44
        $region43: #{tpu_custom_call.1} parent=39 // pred_region
          %s453 = sand.u32 %s91, 1
          %s454 = scalar_lea.sflag [#allocation4], %s453
          %s455 = sand.u32 %s91, 1
          %s456 = smul.addr %s455, 64
          %s457 = scalar_lea.vmem [#allocation5], %s456
          %458 = dma.done %s454, 1024
        $region44: #{tpu_custom_call.1} parent=39 // pred_fallthru
          _
      $region40: #{tpu_custom_call.1} parent=5 // pred_fallthru
        _
    $region6: #{tpu_custom_call.1} parent=1 // loop_footer
      %s18 = sadd.s32 1, %s14
    $region7: #{tpu_custom_call.1} parent=1 // loop_footer_branch
      %13 = sbr.rel target = $region3
    $region8: #{tpu_custom_call.1} parent=1 // loop_exit
      _
    %459 = vsyncpa [#allocation3], 1
    %s460 = scalar_lea.sflag [#allocation3], 1
    %461 = vsyncpa %s460, 1
    %462 = vsyncpa [#allocation4], 1
    %s463 = scalar_lea.sflag [#allocation4], 1
    %464 = vsyncpa %s463, 1

</llo_original>
